<compile_context>
chip_gen: v7x
topology: tpu7x:2x2x1
jax: 0.10.0
libtpu: 0.0.40
codegen_flags: <defaults>
</compile_context>

<pallas_src>
import functools

import jax
import jax.numpy as jnp
from jax import lax
from jax.experimental import pallas as pl
from jax.experimental.pallas import tpu as pltpu

LANES = 128
SUBLANES = 8
MAX_TILE_ROWS = 2048   # 2048 x 128 f32 = 1 MiB per component slab per grid step
CHUNK_ROWS = 64        # rows per inner fori_loop step (bounds live intermediates)


def _accdoa_kernel(chunk, pred_ref, gt_ref, ev_ref, sed_ref, part_ref):
    """pred/gt: (3, TR, 128); ev/sed: (TR, 128); part: (16, 128) per grid step."""
    tile_rows = ev_ref.shape[0]
    n_chunks = tile_rows // chunk          # static Python int
    sub = chunk // SUBLANES                # static Python int

    def body(c, carry):
        doa_acc, sed_acc = carry
        r0 = pl.multiple_of(c * chunk, chunk)
        rs = pl.ds(r0, chunk)

        # Per-component loads: leading-axis indexing, no lane slicing.
        px = pred_ref[0, rs, :].astype(jnp.float32)
        py = pred_ref[1, rs, :].astype(jnp.float32)
        pz = pred_ref[2, rs, :].astype(jnp.float32)
        gx = gt_ref[0, rs, :].astype(jnp.float32)
        gy = gt_ref[1, rs, :].astype(jnp.float32)
        gz = gt_ref[2, rs, :].astype(jnp.float32)
        ev = ev_ref[rs, :].astype(jnp.float32)

        # ---- get_sed_from_accdoa_output ---------------------------------
        sed_ref[rs, :] = jnp.sqrt(px * px + py * py + pz * pz).astype(sed_ref.dtype)

        # ---- compute_classwise_accdoa_loss ------------------------------
        ddx = px - gx
        ddy = py - gy
        ddz = pz - gz
        dx = ddx * ddx
        dy = ddy * ddy
        dz = ddz * ddz

        doa_elem = (dx + dy + dz) * ev                      # (chunk, 128)
        sed_e = jnp.sqrt(dx * dx + dy * dy + dz * dz)       # sqrt of squared resid.
        r = sed_e - ev
        sed_elem = r * r * (1.0 - ev)                       # (chunk, 128)

        # Partial reduction (chunk,128) -> (8,128): sums across vregs at fixed
        # (sublane, lane) positions => pure VPU adds, no XLU in the loop.
        doa_acc = doa_acc + jnp.sum(doa_elem.reshape(sub, SUBLANES, LANES), axis=0)
        sed_acc = sed_acc + jnp.sum(sed_elem.reshape(sub, SUBLANES, LANES), axis=0)
        return doa_acc, sed_acc

    zeros = jnp.zeros((SUBLANES, LANES), jnp.float32)
    doa_acc, sed_acc = lax.fori_loop(0, n_chunks, body, (zeros, zeros))

    # Combined per-step partials output: rows 0..7 = doa, rows 8..15 = sed.
    part_ref[0:SUBLANES, :] = doa_acc
    part_ref[SUBLANES:2 * SUBLANES, :] = sed_acc


def _ceil_to(x, m):
    return -(-x // m) * m


@jax.jit
def accdoa_sed_and_loss(doa_frame_pred, doa_frame_gt, event_frame_gt):
    """
    doa_frame_pred : (B, T, 3*C) float32   -- pred_dict['doa_frame_output']
    doa_frame_gt   : (B, T, 3*C) float32   -- target_dict['doa_frame_gt']
    event_frame_gt : (B, T, C)   float32   -- target_dict['event_frame_gt']

    Returns: sed (B, T, C), sed_loss (scalar), doa_loss (scalar)
    """
    B, T, three_c = doa_frame_pred.shape
    C = event_frame_gt.shape[-1]
    assert three_c == 3 * C
    M = B * T * C            # elements per xyz component
    N = B * T                # PyTorch loss normalizer

    # ---- lane-dense layout plumbing (fused into the pallas_call operands
    # via allow_input_fusion when XLA can; otherwise a single pre-pass) ------
    pred_xyz = jnp.stack(
        [doa_frame_pred[:, :, :C],
         doa_frame_pred[:, :, C:2 * C],
         doa_frame_pred[:, :, 2 * C:]], axis=0).reshape(3, M)
    gt_xyz = jnp.stack(
        [doa_frame_gt[:, :, :C],
         doa_frame_gt[:, :, C:2 * C],
         doa_frame_gt[:, :, 2 * C:]], axis=0).reshape(3, M)
    ev_flat = event_frame_gt.reshape(M)

    rows = _ceil_to(-(-M // LANES), SUBLANES)        # full lanes, mult. of 8
    chunk = CHUNK_ROWS if rows >= CHUNK_ROWS else rows
    rows = _ceil_to(rows, chunk)                     # multiple of the chunk
    tile_rows = min(MAX_TILE_ROWS, rows)             # multiple of chunk by constr.
    rows = _ceil_to(rows, tile_rows)                 # multiple of tile_rows
    grid = rows // tile_rows
    m_pad = rows * LANES

    # Zero padding is loss-neutral: residuals, gt and event mask are all 0.
    pred_xyz = jnp.pad(pred_xyz, ((0, 0), (0, m_pad - M))).reshape(3, rows, LANES)
    gt_xyz = jnp.pad(gt_xyz, ((0, 0), (0, m_pad - M))).reshape(3, rows, LANES)
    ev2 = jnp.pad(ev_flat, (0, m_pad - M)).reshape(rows, LANES)

    cost = pl.CostEstimate(
        flops=25 * m_pad,              # ~25 VPU flops per xyz element
        transcendentals=2 * m_pad,     # two sqrt per element
        bytes_accessed=8 * m_pad * 4,  # 7 input slabs + 1 output slab, f32
    )

    sed2, part = pl.pallas_call(
        functools.partial(_accdoa_kernel, chunk),
        out_shape=(
            jax.ShapeDtypeStruct((rows, LANES), jnp.float32),               # sed slab
            jax.ShapeDtypeStruct((grid, 2 * SUBLANES, LANES), jnp.float32),  # partials
        ),
        grid_spec=pltpu.PrefetchScalarGridSpec(
            num_scalar_prefetch=0,
            grid=(grid,),
            in_specs=[
                pl.BlockSpec((3, tile_rows, LANES), lambda i: (0, i, 0)),
                pl.BlockSpec((3, tile_rows, LANES), lambda i: (0, i, 0)),
                pl.BlockSpec((tile_rows, LANES), lambda i: (i, 0)),
            ],
            out_specs=(
                pl.BlockSpec((tile_rows, LANES), lambda i: (i, 0)),
                pl.BlockSpec((pl.Squeezed(), 2 * SUBLANES, LANES),
                             lambda i: (i, 0, 0)),
            ),
        ),
        compiler_params=pltpu.CompilerParams(
            # every grid step is independent -> shards across TCs on v7x
            dimension_semantics=("parallel",),
            vmem_limit_bytes=48 * 1024 * 1024,
            # let XLA fuse the slice/stack/pad producers into the operands
            allow_input_fusion=[True, True, True],
        ),
        cost_estimate=cost,
    )(pred_xyz, gt_xyz, ev2)

    # Tiny final reductions / reshapes in plain XLA.
    if m_pad == M:
        sed = sed2.reshape(B, T, C)                 # no un-pad pass needed
    else:
        sed = sed2.reshape(-1)[:M].reshape(B, T, C)
    doa_loss = jnp.sum(part[:, :SUBLANES, :]) / N
    sed_loss = jnp.sum(part[:, SUBLANES:, :]) / N
    return sed, sed_loss, doa_loss


def _reference(doa_frame_pred, doa_frame_gt, event_frame_gt):
    """Pure-JAX reference mirroring the PyTorch math."""
    B, T, _ = doa_frame_pred.shape
    C = event_frame_gt.shape[-1]
    N = B * T
    px, py, pz = (doa_frame_pred[:, :, :C],
                  doa_frame_pred[:, :, C:2 * C],
                  doa_frame_pred[:, :, 2 * C:])
    sed = jnp.sqrt(px ** 2 + py ** 2 + pz ** 2)
    diff2 = (doa_frame_pred - doa_frame_gt) ** 2
    x, y, z = diff2[:, :, :C], diff2[:, :, C:2 * C], diff2[:, :, 2 * C:]
    doa_loss = jnp.sum((x + y + z) * event_frame_gt) / N
    # NOTE: matches compute_classwise_accdoa_loss exactly: sqrt of squared residuals.
    sed_e = jnp.sqrt(x ** 2 + y ** 2 + z ** 2)
    sed_loss = jnp.sum((sed_e - event_frame_gt) ** 2 * (1 - event_frame_gt)) / N
    return sed, sed_loss, doa_loss


if __name__ == "__main__":
    # small, forward-consistent shapes: batch=2, n_timesteps=16, n_classes=12
    B, T, C = 2, 16, 12
    key = jax.random.PRNGKey(0)
    k1, k2, k3 = jax.random.split(key, 3)

    doa_frame_pred = jax.random.normal(k1, (B, T, 3 * C), dtype=jnp.float32)
    doa_frame_gt = jax.random.normal(k2, (B, T, 3 * C), dtype=jnp.float32)
    event_frame_gt = (jax.random.uniform(k3, (B, T, C)) > 0.5).astype(jnp.float32)

    sed, sed_loss, doa_loss = accdoa_sed_and_loss(
        doa_frame_pred, doa_frame_gt, event_frame_gt)
    jax.block_until_ready((sed, sed_loss, doa_loss))

    # sanity check against plain-JAX reference
    sed_r, sed_loss_r, doa_loss_r = _reference(
        doa_frame_pred, doa_frame_gt, event_frame_gt)
    assert jnp.allclose(sed, sed_r, atol=1e-5, rtol=1e-5)
    assert jnp.allclose(sed_loss, sed_loss_r, atol=1e-4, rtol=1e-4)
    assert jnp.allclose(doa_loss, doa_loss_r, atol=1e-4, rtol=1e-4)

    print("KERNEL_OK")
</pallas_src>

<mosaic_0001>
module attributes {stable_mosaic.version = 11 : i64} {
  func.func @_accdoa_kernel(%arg0: i32, %arg1: memref<3x8x128xf32, #tpu.memory_space<vmem>>, %arg2: memref<3x8x128xf32, #tpu.memory_space<vmem>>, %arg3: memref<8x128xf32, #tpu.memory_space<vmem>>, %arg4: memref<8x128xf32, #tpu.memory_space<vmem>>, %arg5: memref<1x16x128xf32, #tpu.memory_space<vmem>>) attributes {dimension_semantics = [#tpu.dimension_semantics<parallel>], iteration_bounds = array<i64: 1>, scalar_prefetch = 0 : i64, scratch_operands = 0 : i64, tpu.core_type = #tpu.core_type<tc>, window_params = [{transform_indices = @transform_0, window_bounds = array<i64: 3, 8, 128>}, {transform_indices = @transform_1, window_bounds = array<i64: 3, 8, 128>}, {transform_indices = @transform_2, window_bounds = array<i64: 8, 128>}, {transform_indices = @transform_3, window_bounds = array<i64: 8, 128>}, {transform_indices = @transform_4, window_bounds = array<i64: 1, 16, 128>}]} {
    %cst = arith.constant 0.000000e+00 : f32
    %0 = vector.broadcast %cst : f32 to vector<8x128xf32>
    %c0_i32 = arith.constant 0 : i32
    %c8_i32 = arith.constant 8 : i32
    %1 = arith.muli %c0_i32, %c8_i32 : i32
    %2 = tpu.assume_multiple %1, 8 : i32
    %c0 = arith.constant 0 : index
    %3 = arith.index_cast %2 : i32 to index
    %c0_0 = arith.constant 0 : index
    %4 = vector.load %arg1[%c0, %3, %c0_0] : memref<3x8x128xf32, #tpu.memory_space<vmem>>, vector<1x8x128xf32>
    %5 = vector.shape_cast %4 : vector<1x8x128xf32> to vector<8x128xf32>
    %c1 = arith.constant 1 : index
    %6 = arith.index_cast %2 : i32 to index
    %c0_1 = arith.constant 0 : index
    %7 = vector.load %arg1[%c1, %6, %c0_1] : memref<3x8x128xf32, #tpu.memory_space<vmem>>, vector<1x8x128xf32>
    %8 = vector.shape_cast %7 : vector<1x8x128xf32> to vector<8x128xf32>
    %c2 = arith.constant 2 : index
    %9 = arith.index_cast %2 : i32 to index
    %c0_2 = arith.constant 0 : index
    %10 = vector.load %arg1[%c2, %9, %c0_2] : memref<3x8x128xf32, #tpu.memory_space<vmem>>, vector<1x8x128xf32>
    %11 = vector.shape_cast %10 : vector<1x8x128xf32> to vector<8x128xf32>
    %c0_3 = arith.constant 0 : index
    %12 = arith.index_cast %2 : i32 to index
    %c0_4 = arith.constant 0 : index
    %13 = vector.load %arg2[%c0_3, %12, %c0_4] : memref<3x8x128xf32, #tpu.memory_space<vmem>>, vector<1x8x128xf32>
    %14 = vector.shape_cast %13 : vector<1x8x128xf32> to vector<8x128xf32>
    %c1_5 = arith.constant 1 : index
    %15 = arith.index_cast %2 : i32 to index
    %c0_6 = arith.constant 0 : index
    %16 = vector.load %arg2[%c1_5, %15, %c0_6] : memref<3x8x128xf32, #tpu.memory_space<vmem>>, vector<1x8x128xf32>
    %17 = vector.shape_cast %16 : vector<1x8x128xf32> to vector<8x128xf32>
    %c2_7 = arith.constant 2 : index
    %18 = arith.index_cast %2 : i32 to index
    %c0_8 = arith.constant 0 : index
    %19 = vector.load %arg2[%c2_7, %18, %c0_8] : memref<3x8x128xf32, #tpu.memory_space<vmem>>, vector<1x8x128xf32>
    %20 = vector.shape_cast %19 : vector<1x8x128xf32> to vector<8x128xf32>
    %21 = arith.index_cast %2 : i32 to index
    %c0_9 = arith.constant 0 : index
    %22 = vector.load %arg3[%21, %c0_9] : memref<8x128xf32, #tpu.memory_space<vmem>>, vector<8x128xf32>
    %23 = arith.mulf %5, %5 : vector<8x128xf32>
    %24 = arith.mulf %8, %8 : vector<8x128xf32>
    %25 = arith.addf %23, %24 : vector<8x128xf32>
    %26 = arith.mulf %11, %11 : vector<8x128xf32>
    %27 = arith.addf %25, %26 : vector<8x128xf32>
    %28 = math.sqrt %27 : vector<8x128xf32>
    %29 = arith.index_cast %2 : i32 to index
    %c0_10 = arith.constant 0 : index
    %30 = vector.load %arg4[%29, %c0_10] : memref<8x128xf32, #tpu.memory_space<vmem>>, vector<8x128xf32>
    tpu.vector_store %arg4[%29, %c0_10], %28 {strides = array<i32>} : memref<8x128xf32, #tpu.memory_space<vmem>>, vector<8x128xf32>,
    %31 = arith.subf %5, %14 : vector<8x128xf32>
    %32 = arith.subf %8, %17 : vector<8x128xf32>
    %33 = arith.subf %11, %20 : vector<8x128xf32>
    %34 = arith.mulf %31, %31 : vector<8x128xf32>
    %35 = arith.mulf %32, %32 : vector<8x128xf32>
    %36 = arith.mulf %33, %33 : vector<8x128xf32>
    %37 = arith.addf %34, %35 : vector<8x128xf32>
    %38 = arith.addf %37, %36 : vector<8x128xf32>
    %39 = arith.mulf %38, %22 : vector<8x128xf32>
    %40 = arith.mulf %34, %34 : vector<8x128xf32>
    %41 = arith.mulf %35, %35 : vector<8x128xf32>
    %42 = arith.addf %40, %41 : vector<8x128xf32>
    %43 = arith.mulf %36, %36 : vector<8x128xf32>
    %44 = arith.addf %42, %43 : vector<8x128xf32>
    %45 = math.sqrt %44 : vector<8x128xf32>
    %46 = arith.subf %45, %22 : vector<8x128xf32>
    %47 = arith.mulf %46, %46 : vector<8x128xf32>
    %cst_11 = arith.constant 1.000000e+00 : f32
    %48 = vector.broadcast %cst_11 : f32 to vector<8x128xf32>
    %49 = arith.subf %48, %22 : vector<8x128xf32>
    %50 = arith.mulf %47, %49 : vector<8x128xf32>
    %51 = vector.shape_cast %39 : vector<8x128xf32> to vector<1x8x128xf32>
    %cst_12 = arith.constant dense<0.000000e+00> : vector<8x128xf32>
    %52 = vector.multi_reduction <add>, %51, %cst_12 [0] : vector<1x8x128xf32> to vector<8x128xf32>
    %53 = arith.addf %0, %52 : vector<8x128xf32>
    %54 = vector.shape_cast %50 : vector<8x128xf32> to vector<1x8x128xf32>
    %cst_13 = arith.constant dense<0.000000e+00> : vector<8x128xf32>
    %55 = vector.multi_reduction <add>, %54, %cst_13 [0] : vector<1x8x128xf32> to vector<8x128xf32>
    %56 = arith.addf %0, %55 : vector<8x128xf32>
    %c1_i32 = arith.constant 1 : i32
    %c0_14 = arith.constant 0 : index
    %c0_15 = arith.constant 0 : index
    %c0_16 = arith.constant 0 : index
    %57 = vector.load %arg5[%c0_14, %c0_15, %c0_16] : memref<1x16x128xf32, #tpu.memory_space<vmem>>, vector<1x8x128xf32>
    %58 = vector.shape_cast %57 : vector<1x8x128xf32> to vector<8x128xf32>
    %59 = vector.shape_cast %53 : vector<8x128xf32> to vector<1x8x128xf32>
    tpu.vector_store %arg5[%c0_14, %c0_15, %c0_16], %59 {strides = array<i32>} : memref<1x16x128xf32, #tpu.memory_space<vmem>>, vector<1x8x128xf32>,
    %c0_17 = arith.constant 0 : index
    %c8 = arith.constant 8 : index
    %c0_18 = arith.constant 0 : index
    %60 = vector.load %arg5[%c0_17, %c8, %c0_18] : memref<1x16x128xf32, #tpu.memory_space<vmem>>, vector<1x8x128xf32>
    %61 = vector.shape_cast %60 : vector<1x8x128xf32> to vector<8x128xf32>
    %62 = vector.shape_cast %56 : vector<8x128xf32> to vector<1x8x128xf32>
    tpu.vector_store %arg5[%c0_17, %c8, %c0_18], %62 {strides = array<i32>} : memref<1x16x128xf32, #tpu.memory_space<vmem>>, vector<1x8x128xf32>,
    return
  }
  func.func @transform_0(%arg0: i32) -> (i32, i32, i32) {
    %c0_i32 = arith.constant 0 : i32
    %c0_i32_0 = arith.constant 0 : i32
    %c0_i32_1 = arith.constant 0 : i32
    return %c0_i32, %arg0, %c0_i32_0 : i32, i32, i32
  }
  func.func @transform_1(%arg0: i32) -> (i32, i32, i32) {
    %c0_i32 = arith.constant 0 : i32
    %c0_i32_0 = arith.constant 0 : i32
    %c0_i32_1 = arith.constant 0 : i32
    return %c0_i32, %arg0, %c0_i32_0 : i32, i32, i32
  }
  func.func @transform_2(%arg0: i32) -> (i32, i32) {
    %c0_i32 = arith.constant 0 : i32
    %c0_i32_0 = arith.constant 0 : i32
    return %arg0, %c0_i32 : i32, i32
  }
  func.func @transform_3(%arg0: i32) -> (i32, i32) {
    %c0_i32 = arith.constant 0 : i32
    %c0_i32_0 = arith.constant 0 : i32
    return %arg0, %c0_i32 : i32, i32
  }
  func.func @transform_4(%arg0: i32) -> (i32, i32, i32) {
    %c0_i32 = arith.constant 0 : i32
    %c0_i32_0 = arith.constant 0 : i32
    %c0_i32_1 = arith.constant 0 : i32
    return %arg0, %c0_i32, %c0_i32_0 : i32, i32, i32
  }
}

</mosaic_0001>

<llo_original>
// kernel: accdoa_sed_and_loss.2
$region0: #{accdoa_sed_and_loss.2}
  #allocation0 [shape = 'u32[]', space=smem, size = 0x4, offset = 0x4, fixed_abs, tag = 'smem constant byte address 0x4 - core index']
  #allocation1 [shape = 'u32[144,128]{1,0:T(1,128)}', space=vmem, size = 0x12000, scoped, tag = 'internal scratch']
  #allocation2 [shape = 'u32[2048]{0}', space=vmem, size = 0x2000, scoped, tag = 'scoped memory for accdoa_sed_and_loss.2']
  #allocation3 [shape = 'u32[2048]{0}', space=vmem, size = 0x2000, scoped, tag = 'scoped memory for accdoa_sed_and_loss.2']
  #allocation4 [shape = 'u32[2048]{0}', space=vmem, size = 0x2000, scoped, tag = 'scoped memory for accdoa_sed_and_loss.2']
  #allocation5 [shape = 'u32[2048]{0}', space=vmem, size = 0x2000, scoped, tag = 'scoped memory for accdoa_sed_and_loss.2']
  #allocation6 [shape = 'u32[2048]{0}', space=vmem, size = 0x2000, scoped, tag = 'scoped memory for accdoa_sed_and_loss.2']
  %s0 = inlined_call_operand.vmem [shape: f32[1,3,8,128], index: 0, kind: input, shape index: {}]
  %s1 = inlined_call_operand.vmem [shape: f32[1,3,8,128], index: 1, kind: input, shape index: {}]
  %s2 = inlined_call_operand.vmem [shape: f32[384], index: 2, kind: input, shape index: {}]
  %s3 = inlined_call_operand.<no memory space> [shape: f32[], index: 3, kind: input, shape index: {}]
  %s4 = inlined_call_operand.vmem [shape: f32[8,128], index: 4, kind: output, shape index: {0}]
  %s5 = inlined_call_operand.vmem [shape: f32[1,16,128], index: 5, kind: output, shape index: {1}]
  %6 = xla_tuple %s4, %s5
  %s7 = sld [smem:[#allocation0]]
  $region30: #{accdoa_sed_and_loss.2} parent=0
    _
  %s9 = ssub.s32 1, %s7
  %s10 = scalar_select 0, %s9, %s7
  %v11 = vstv %s3
  $region1: #{accdoa_sed_and_loss.2} parent=0
    #allocation7 [shape = 'u8[12288]{0}', space=vmem, size = 0x3000, dematerialized = true, scoped, tag = 'FusionAdapter Buffer %fusion.4 = f32[3,8,128]{2,1,0:T(8,128)} fusion(%param_1.26), kind=kLoop, calls=%fused_computation.9.clone, metadata={op_name="jit(accdoa_sed_and_loss)/reshape" stack_frame_id=21}']
    #allocation8 [shape = 'u8[12288]{0}', space=vmem, size = 0x3000, dematerialized = true, scoped, tag = 'FusionAdapter Buffer %fusion.3 = f32[3,8,128]{2,1,0:T(8,128)} fusion(%param_0.26), kind=kLoop, calls=%fused_computation.8.clone, metadata={op_name="jit(accdoa_sed_and_loss)/reshape" stack_frame_id=23}']
    #allocation9 [shape = 'u8[4096]{0}', space=vmem, size = 0x1000, dematerialized = true, scoped, tag = 'FusionAdapter Buffer %fusion.5 = f32[8,128]{1,0:T(8,128)} fusion(%param_2.22, %param_3.19), kind=kLoop, calls=%fused_computation.10.clone, metadata={op_name="jit(accdoa_sed_and_loss)/reshape" stack_frame_id=25}']
    // Predicated region
    $region2: #{accdoa_sed_and_loss.2} parent=1 // pred_check
      _
    $region3: #{accdoa_sed_and_loss.2} parent=1 // pred_check_branch
      %13 = sbr.rel (0) target = $region5
    $region4: #{accdoa_sed_and_loss.2} parent=1 // pred_region
      _
    $region5: #{accdoa_sed_and_loss.2} parent=1 // pred_fallthru
      _
    // Predicated region
    $region6: #{accdoa_sed_and_loss.2} parent=1 // pred_check
      _
    $region7: #{accdoa_sed_and_loss.2} parent=1 // pred_check_branch
      %15 = sbr.rel (0) target = $region9
    $region8: #{accdoa_sed_and_loss.2} parent=1 // pred_region
      _
    $region9: #{accdoa_sed_and_loss.2} parent=1 // pred_fallthru
      _
    // Predicated region
    $region10: #{accdoa_sed_and_loss.2} parent=1 // pred_check
      _
    $region11: #{accdoa_sed_and_loss.2} parent=1 // pred_check_branch
      %17 = sbr.rel (0) target = $region13
    $region12: #{accdoa_sed_and_loss.2} parent=1 // pred_region
      _
    $region13: #{accdoa_sed_and_loss.2} parent=1 // pred_fallthru
      _
    %v18 = vld [vmem:[%s1] sm:$0xff]
    %20 = vst [vmem:[#allocation7] sm:$0xff] %v18
    %s21 = scalar_lea.vmem %s1, 8
    %v22 = vld [vmem:[%s21] sm:$0xff]
    %s23 = scalar_lea.vmem [#allocation7], 8
    %25 = vst [vmem:[%s23] sm:$0xff] %v22
    %s26 = scalar_lea.vmem %s1, 16
    %v27 = vld [vmem:[%s26] sm:$0xff]
    %s28 = scalar_lea.vmem [#allocation7], 16
    %30 = vst [vmem:[%s28] sm:$0xff] %v27
    %v31 = vld [vmem:[%s0] sm:$0xff]
    %33 = vst [vmem:[#allocation8] sm:$0xff] %v31
    %s34 = scalar_lea.vmem %s0, 8
    %v35 = vld [vmem:[%s34] sm:$0xff]
    %s36 = scalar_lea.vmem [#allocation8], 8
    %38 = vst [vmem:[%s36] sm:$0xff] %v35
    %s39 = scalar_lea.vmem %s0, 16
    %v40 = vld [vmem:[%s39] sm:$0xff]
    %s41 = scalar_lea.vmem [#allocation8], 16
    %43 = vst [vmem:[%s41] sm:$0xff] %v40
    %v44 = vld [vmem:[%s2] sm:$0x7]
    %v45 = vlaneseq
    %vm47 = vcmp.lt.s32.totalorder %v45, 384
    %v48 = vsel %vm47, %v44, %v11
    %50 = vst [vmem:[#allocation9] sm:$0xff] %v48
    %v51 = vld [vmem:[#allocation7] sm:$0xff]
    %s52 = sadd.s32 0, 8
    %s53 = scalar_lea.vmem [#allocation7], %s52
    %v54 = vld [vmem:[%s53] sm:$0xff]
    %s55 = sadd.s32 0, 16
    %s56 = scalar_lea.vmem [#allocation7], %s55
    %v57 = vld [vmem:[%s56] sm:$0xff]
    %v58 = vld [vmem:[#allocation8] sm:$0xff]
    %s59 = scalar_lea.vmem [#allocation8], %s52
    %v60 = vld [vmem:[%s59] sm:$0xff]
    %s61 = scalar_lea.vmem [#allocation8], %s55
    %v62 = vld [vmem:[%s61] sm:$0xff]
    %v63 = vld [vmem:[#allocation9] sm:$0xff]
    %v64 = vmul.f32 %v51, %v51
    %v65 = vmul.f32 %v54, %v54
    %v66 = vadd.f32 %v64, %v65
    %v67 = vmul.f32 %v57, %v57
    %v68 = vadd.f32 %v66, %v67
    %v69 = vrsqrt.pop %v68
    %v70 = vmul.f32 %v68, %v69
    %vm71 = vcmp.eq.f32.partialorder %v68, inf
    %v72 = vsel %vm71, %v68, %v70
    %vm73 = vcmp.eq.f32.partialorder %v68, 0.0
    %v74 = vand.u32 %v68, 2147483648
    %v75 = vsel %vm73, %v74, %v72
    %76 = vst [vmem:[%s4] sm:$0xff] %v75
    %v77 = vsub.f32 %v51, %v58
    %v78 = vsub.f32 %v54, %v60
    %v79 = vsub.f32 %v57, %v62
    %v80 = vmul.f32 %v77, %v77
    %v81 = vmul.f32 %v78, %v78
    %v82 = vmul.f32 %v79, %v79
    %v83 = vadd.f32 %v80, %v81
    %v84 = vadd.f32 %v83, %v82
    %v85 = vmul.f32 %v84, %v63
    %v86 = vmul.f32 %v80, %v80
    %v87 = vmul.f32 %v81, %v81
    %v88 = vadd.f32 %v86, %v87
    %v89 = vmul.f32 %v82, %v82
    %v90 = vadd.f32 %v88, %v89
    %v91 = vrsqrt.pop %v90
    %v92 = vmul.f32 %v90, %v91
    %vm93 = vcmp.eq.f32.partialorder %v90, inf
    %v94 = vsel %vm93, %v90, %v92
    %vm95 = vcmp.eq.f32.partialorder %v90, 0.0
    %v96 = vand.u32 %v90, 2147483648
    %v97 = vsel %vm95, %v96, %v94
    %v98 = vsub.f32 %v97, %v63
    %v99 = vmul.f32 %v98, %v98
    %v100 = vsub.f32 1.0, %v63
    %v101 = vmul.f32 %v99, %v100
    %v102 = vadd.f32 %v85, 0.0
    %v103 = vadd.f32 %v102, 0.0
    %v104 = vadd.f32 %v101, 0.0
    %v105 = vadd.f32 %v104, 0.0
    %106 = vst [vmem:[%s5] sm:$0xff] %v103
    %107 = vst [vmem:[%s5 + $0x8] sm:$0xff] %v105
    // Predicated region
    $region14: #{accdoa_sed_and_loss.2} parent=1 // pred_check
      _
    $region15: #{accdoa_sed_and_loss.2} parent=1 // pred_check_branch
      %109 = sbr.rel (0) target = $region17
    $region16: #{accdoa_sed_and_loss.2} parent=1 // pred_region
      _
    $region17: #{accdoa_sed_and_loss.2} parent=1 // pred_fallthru
      _
    // Predicated region
    $region18: #{accdoa_sed_and_loss.2} parent=1 // pred_check
      _
    $region19: #{accdoa_sed_and_loss.2} parent=1 // pred_check_branch
      %111 = sbr.rel (0) target = $region21
    $region20: #{accdoa_sed_and_loss.2} parent=1 // pred_region
      _
    $region21: #{accdoa_sed_and_loss.2} parent=1 // pred_fallthru
      _
    // Predicated region
    $region22: #{accdoa_sed_and_loss.2} parent=1 // pred_check
      _
    $region23: #{accdoa_sed_and_loss.2} parent=1 // pred_check_branch
      %113 = sbr.rel (0) target = $region25
    $region24: #{accdoa_sed_and_loss.2} parent=1 // pred_region
      _
    $region25: #{accdoa_sed_and_loss.2} parent=1 // pred_fallthru
      _
    // Predicated region
    $region26: #{accdoa_sed_and_loss.2} parent=1 // pred_check
      _
    $region27: #{accdoa_sed_and_loss.2} parent=1 // pred_check_branch
      %115 = sbr.rel (0) target = $region29
    $region28: #{accdoa_sed_and_loss.2} parent=1 // pred_region
      _
    $region29: #{accdoa_sed_and_loss.2} parent=1 // pred_fallthru
      _

</llo_original>
